<compile_context>
chip_gen: v5e
topology: v5e:2x2
jax: 0.10.0
libtpu: 0.0.40
codegen_flags: <defaults>
</compile_context>

<pallas_src>
import functools

import numpy as np
import jax
import jax.numpy as jnp
from jax import lax
from jax.experimental import pallas as pl
from jax.experimental.pallas import tpu as pltpu

_BIG = 1e30      # plain Python float -> lowers to a literal (no captured const)
_LANES = 128


def _triplet_tile_kernel(xr_ref, xtc_ref, sqr_ref, tr_ref, colmeta_ref,
                         out_ref, maxh_ref, minh_ref, *, margin):
    j = pl.program_id(1)

    @pl.when(j == 0)
    def _init():
        maxh_ref[...] = jnp.full_like(maxh_ref, -_BIG)
        minh_ref[...] = jnp.full_like(minh_ref, _BIG)

    # gram[r, c] = <x_r, x_c>; column operand arrives pre-transposed so the
    # contraction is canonical (no in-kernel XLU transpose).  Native dtype on
    # the MXU, f32 accumulation.
    gram = lax.dot_general(
        xr_ref[...], xtc_ref[...],
        dimension_numbers=(((1,), (0,)), ((), ())),
        preferred_element_type=jnp.float32,
    )                                                        # (TM, TN) f32

    half_sqc = colmeta_ref[0:1, :]                           # (1, TN)  0.5*||x_c||^2
    t_c = colmeta_ref[1:2, :]                                # (1, TN)  labels (f32)
    t_r = tr_ref[...]                                        # (TM, 1)  labels (f32)

    # h[r,c] = 0.5*||x_c||^2 - <x_r,x_c>;  dist^2 = 2*h + ||x_r||^2 is monotone
    # in h for fixed r, so max/min run on h and the row-norm add / *2 are
    # deferred to finalize.
    h = half_sqc - gram

    same = t_r == t_c
    # pos mask is just `same`: rows with label -1 are zeroed at finalize.
    neg_mask = jnp.logical_and(jnp.logical_not(same), t_c != -1.0)

    masked_pos = jnp.where(same, h, -_BIG)
    masked_neg = jnp.where(neg_mask, h, _BIG)

    # Fold the TN columns into lane-wide (TM, 128) accumulators with pure-VPU
    # elementwise max/min; the single cross-lane (XLU) reduce is deferred to
    # finalize so it never contends with MXU pushes in the inner loop.
    pos_fold = maxh_ref[...]
    neg_fold = minh_ref[...]
    for c in range(masked_pos.shape[1] // _LANES):
        sl = slice(c * _LANES, (c + 1) * _LANES)
        pos_fold = jnp.maximum(pos_fold, masked_pos[:, sl])
        neg_fold = jnp.minimum(neg_fold, masked_neg[:, sl])
    maxh_ref[...] = pos_fold
    minh_ref[...] = neg_fold

    @pl.when(j == pl.num_programs(1) - 1)
    def _finalize():
        sq_r = sqr_ref[...]                                  # (TM, 1)
        max_h = jnp.max(maxh_ref[...], axis=1, keepdims=True)
        min_h = jnp.min(minh_ref[...], axis=1, keepdims=True)
        dist_ap = jnp.sqrt(jnp.maximum(2.0 * max_h + sq_r, 1e-12))
        dist_an = jnp.sqrt(jnp.maximum(2.0 * min_h + sq_r, 1e-12))
        per_row = jnp.maximum(dist_ap - dist_an + margin, 0.0)
        valid_f = (t_r != -1.0).astype(jnp.float32)
        # TODO(synk): PyTorch raises if a valid row has no valid negative (or
        # if every label is -1); this kernel yields a 0 contribution instead.
        out_ref[...] = per_row * valid_f


def _round_up(x, m):
    return ((x + m - 1) // m) * m


def triplet_loss_filter(inputs, targets, margin=0.3):
    """inputs: (N, D) float (f32 or bf16); targets: (N,) int, label -1 ignored.

    Returns the scalar hard-mining triplet loss (f32) averaged over rows with
    label != -1 (0.0 if no row is valid).
    """
    n, d = inputs.shape
    t = targets.astype(jnp.int32)

    # Tile heuristic: last-two block dims respect (8,128); keep the VMEM
    # footprint well under the v7x 64 MiB physical limit (>= 2 row blocks
    # whenever N allows, so both v7x TensorCores get work).
    if n <= 128:
        tile = 128
    elif n <= 2048:
        tile = 256
    else:
        tile = 512
    n_pad = _round_up(n, tile)
    d_pad = _round_up(d, 128)

    x = inputs
    if (n_pad, d_pad) != (n, d):
        x = jnp.pad(x, ((0, n_pad - n), (0, d_pad - d)))     # zero features
    t_pad = jnp.pad(t, (0, n_pad - n), constant_values=-1)   # padded rows ignored

    # Squared norms built once in f32; labels carried as f32 (exact for class
    # indices) so the per-column metadata packs into a single (2, N) operand.
    x32 = x.astype(jnp.float32)
    sq = jnp.sum(x32 * x32, axis=1)                          # (n_pad,)
    t_f = t_pad.astype(jnp.float32)

    row_sq = sq.reshape(n_pad, 1)                            # ||x_r||^2
    row_lab = t_f.reshape(n_pad, 1)
    col_meta = jnp.stack([0.5 * sq, t_f], axis=0)            # (2, n_pad)
    x_t = x.T                                                # (d_pad, n_pad), native dtype

    grid = (n_pad // tile, n_pad // tile)
    itemsize = int(x.dtype.itemsize)

    # Explicit VMEM budget: double-buffered inputs + (TM,TN) f32 temporaries +
    # resident scratch + headroom (v5e scoped default is only 16 MiB).
    vmem_bytes = (
        2 * tile * d_pad * itemsize          # row x tile (double buffered)
        + 2 * d_pad * tile * itemsize        # col x^T tile (double buffered)
        + 2 * 2 * tile * 4                   # row sq + row labels
        + 2 * 2 * tile * 4                   # packed column metadata
        + 2 * tile * 4                       # output
        + 2 * tile * 128 * 4                 # scratch accumulators
        + 8 * tile * tile * 4                # live (TM,TN) f32 temporaries
        + (4 << 20)                          # headroom
    )
    vmem_bytes = min(int(vmem_bytes), 48 << 20)

    kernel = functools.partial(_triplet_tile_kernel, margin=float(margin))
    per_row = pl.pallas_call(
        kernel,
        out_shape=jax.ShapeDtypeStruct((n_pad, 1), jnp.float32),
        grid_spec=pltpu.PrefetchScalarGridSpec(
            num_scalar_prefetch=0,
            grid=grid,
            in_specs=[
                pl.BlockSpec((tile, d_pad), lambda i, j: (i, 0)),   # x row tile
                pl.BlockSpec((d_pad, tile), lambda i, j: (0, j)),   # x^T col tile
                pl.BlockSpec((tile, 1), lambda i, j: (i, 0)),       # ||x_r||^2
                pl.BlockSpec((tile, 1), lambda i, j: (i, 0)),       # row labels (f32)
                pl.BlockSpec((2, tile), lambda i, j: (0, j)),       # col 0.5*||x||^2 + labels
            ],
            out_specs=pl.BlockSpec((tile, 1), lambda i, j: (i, 0)),
            scratch_shapes=[
                pltpu.VMEM((tile, 128), jnp.float32),   # running max pos h
                pltpu.VMEM((tile, 128), jnp.float32),   # running min neg h
            ],
        ),
        compiler_params=pltpu.CompilerParams(
            dimension_semantics=("parallel", "arbitrary"),
            vmem_limit_bytes=vmem_bytes),
        cost_estimate=pl.CostEstimate(
            flops=2 * n_pad * n_pad * d_pad,
            transcendentals=2 * n_pad,
            bytes_accessed=(n_pad // tile) * n_pad * d_pad * itemsize
                           + n_pad * d_pad * itemsize + 16 * n_pad),
    )(x, x_t, row_sq, row_lab, col_meta)

    n_valid = jnp.sum((t != -1).astype(jnp.float32))
    total = jnp.sum(per_row)
    return jnp.where(n_valid > 0, total / n_valid, jnp.float32(0.0))


def _reference_numpy(inputs, targets, margin=0.3):
    """Direct port of the PyTorch forward (filter -> dist -> hard mining -> loss)."""
    x = np.asarray(inputs, dtype=np.float64)
    t = np.asarray(targets)
    keep = t != -1
    x = x[keep]
    t = t[keep]
    n = x.shape[0]
    sq = np.sum(x * x, axis=1, keepdims=True)
    dist = sq + sq.T - 2.0 * x @ x.T
    dist = np.sqrt(np.clip(dist, 1e-12, None))
    mask = t[:, None] == t[None, :]
    dist_ap = np.array([dist[i][mask[i]].max() for i in range(n)])
    dist_an = np.array([dist[i][~mask[i]].min() for i in range(n)])
    return float(np.mean(np.maximum(dist_ap - dist_an + margin, 0.0)))


if __name__ == "__main__":
    key = jax.random.PRNGKey(0)

    # --- small f32 case (matches the module's (batch, feat_dim) inputs) ------
    N, D = 8, 32
    k1, k2 = jax.random.split(key)
    inputs = jax.random.normal(k1, (N, D), dtype=jnp.float32)
    # Two "noise" samples (-1) that must be ignored; several distinct classes.
    targets = jnp.array([0, 1, 0, -1, 1, 2, 2, -1], dtype=jnp.int32)

    loss = jax.block_until_ready(triplet_loss_filter(inputs, targets, margin=0.3))
    ref = _reference_numpy(np.asarray(inputs), np.asarray(targets), margin=0.3)
    np.testing.assert_allclose(float(loss), ref, rtol=1e-4, atol=1e-5)

    # --- larger case exercising padding + the multi-tile (parallel, arbitrary)
    #     grid (N=300 -> padded to 512, grid (2, 2); D=48 -> padded to 128) ---
    N2, D2 = 300, 48
    inputs2 = jax.random.normal(k2, (N2, D2), dtype=jnp.float32)
    targets2 = (jnp.arange(N2, dtype=jnp.int32) % 5) - 1   # labels in {-1,0,1,2,3}
    loss2 = jax.block_until_ready(triplet_loss_filter(inputs2, targets2, margin=0.3))
    ref2 = _reference_numpy(np.asarray(inputs2), np.asarray(targets2), margin=0.3)
    np.testing.assert_allclose(float(loss2), ref2, rtol=1e-4, atol=1e-5)

    # --- bf16 fast-MXU path (native-dtype gram, f32 accumulation) ------------
    loss_bf16 = jax.block_until_ready(
        triplet_loss_filter(inputs.astype(jnp.bfloat16), targets, margin=0.3))
    np.testing.assert_allclose(float(loss_bf16), ref, rtol=1e-1, atol=1e-1)

    print("KERNEL_OK")
</pallas_src>

<mosaic_0001>
module attributes {stable_mosaic.version = 11 : i64} {
  func.func @_triplet_tile_kernel(%arg0: i32, %arg1: i32, %arg2: memref<128x128xf32, #tpu.memory_space<vmem>>, %arg3: memref<128x128xf32, #tpu.memory_space<vmem>>, %arg4: memref<128x1xf32, #tpu.memory_space<vmem>>, %arg5: memref<128x1xf32, #tpu.memory_space<vmem>>, %arg6: memref<2x128xf32, #tpu.memory_space<vmem>>, %arg7: memref<128x1xf32, #tpu.memory_space<vmem>>, %arg8: memref<128x128xf32, #tpu.memory_space<vmem>>, %arg9: memref<128x128xf32, #tpu.memory_space<vmem>>) attributes {dimension_semantics = [#tpu.dimension_semantics<parallel>, #tpu.dimension_semantics<arbitrary>], iteration_bounds = array<i64: 1, 1>, scalar_prefetch = 0 : i64, scratch_operands = 2 : i64, tpu.core_type = #tpu.core_type<tc>, window_params = [{transform_indices = @transform_0, window_bounds = array<i64: 128, 128>}, {transform_indices = @transform_1, window_bounds = array<i64: 128, 128>}, {transform_indices = @transform_2, window_bounds = array<i64: 128, 1>}, {transform_indices = @transform_3, window_bounds = array<i64: 128, 1>}, {transform_indices = @transform_4, window_bounds = array<i64: 2, 128>}, {transform_indices = @transform_5, window_bounds = array<i64: 128, 1>}]} {
    %c0_i32 = arith.constant 0 : i32
    %0 = arith.cmpi eq, %arg1, %c0_i32 : i32
    %1 = arith.extui %0 : i1 to i32
    %c0_i32_0 = arith.constant 0 : i32
    %2 = arith.cmpi ne, %1, %c0_i32_0 : i32
    scf.if %2 {
      %cst_23 = arith.constant -1.000000e+30 : f32
      %32 = vector.broadcast %cst_23 : f32 to vector<128x128xf32>
      %c0_24 = arith.constant 0 : index
      %c0_25 = arith.constant 0 : index
      %33 = vector.load %arg8[%c0_24, %c0_25] : memref<128x128xf32, #tpu.memory_space<vmem>>, vector<128x128xf32>
      tpu.vector_store %arg8[%c0_24, %c0_25], %32 {strides = array<i32>} : memref<128x128xf32, #tpu.memory_space<vmem>>, vector<128x128xf32>,
      %cst_26 = arith.constant 1.000000e+30 : f32
      %34 = vector.broadcast %cst_26 : f32 to vector<128x128xf32>
      %c0_27 = arith.constant 0 : index
      %c0_28 = arith.constant 0 : index
      %35 = vector.load %arg9[%c0_27, %c0_28] : memref<128x128xf32, #tpu.memory_space<vmem>>, vector<128x128xf32>
      tpu.vector_store %arg9[%c0_27, %c0_28], %34 {strides = array<i32>} : memref<128x128xf32, #tpu.memory_space<vmem>>, vector<128x128xf32>,
    } else {
    }
    %c0 = arith.constant 0 : index
    %c0_1 = arith.constant 0 : index
    %3 = vector.load %arg2[%c0, %c0_1] : memref<128x128xf32, #tpu.memory_space<vmem>>, vector<128x128xf32>
    %c0_2 = arith.constant 0 : index
    %c0_3 = arith.constant 0 : index
    %4 = vector.load %arg3[%c0_2, %c0_3] : memref<128x128xf32, #tpu.memory_space<vmem>>, vector<128x128xf32>
    %cst = arith.constant dense<0.000000e+00> : vector<128x128xf32>
    %5 = tpu.matmul %3, %4, %cst {dimension_numbers = #tpu.dot_dimension_numbers<[1], [0], [0], [1], [0, 0, 1, 1], [], []>} : vector<128x128xf32>, vector<128x128xf32>, vector<128x128xf32> -> vector<128x128xf32>
    %c0_4 = arith.constant 0 : index
    %c0_5 = arith.constant 0 : index
    %6 = vector.load %arg6[%c0_4, %c0_5] : memref<2x128xf32, #tpu.memory_space<vmem>>, vector<1x128xf32>
    %c1 = arith.constant 1 : index
    %c0_6 = arith.constant 0 : index
    %7 = vector.load %arg6[%c1, %c0_6] : memref<2x128xf32, #tpu.memory_space<vmem>>, vector<1x128xf32>
    %c0_7 = arith.constant 0 : index
    %c0_8 = arith.constant 0 : index
    %8 = vector.load %arg5[%c0_7, %c0_8] : memref<128x1xf32, #tpu.memory_space<vmem>>, vector<128x1xf32>
    %9 = vector.broadcast %6 : vector<1x128xf32> to vector<128x128xf32>
    %10 = arith.subf %9, %5 : vector<128x128xf32>
    %11 = vector.broadcast %8 : vector<128x1xf32> to vector<128x128xf32>
    %12 = vector.broadcast %7 : vector<1x128xf32> to vector<128x128xf32>
    %13 = arith.cmpf oeq, %11, %12 : vector<128x128xf32>
    %cst_9 = arith.constant dense<true> : vector<128x128xi1>
    %14 = arith.xori %13, %cst_9 : vector<128x128xi1>
    %cst_10 = arith.constant -1.000000e+00 : f32
    %15 = vector.broadcast %cst_10 : f32 to vector<1x128xf32>
    %16 = arith.cmpf one, %7, %15 : vector<1x128xf32>
    %17 = vector.broadcast %16 : vector<1x128xi1> to vector<128x128xi1>
    %18 = arith.andi %14, %17 : vector<128x128xi1>
    %cst_11 = arith.constant -1.000000e+30 : f32
    %19 = vector.broadcast %cst_11 : f32 to vector<128x128xf32>
    %20 = arith.select %13, %10, %19 : vector<128x128xi1>, vector<128x128xf32>
    %cst_12 = arith.constant 1.000000e+30 : f32
    %21 = vector.broadcast %cst_12 : f32 to vector<128x128xf32>
    %22 = arith.select %18, %10, %21 : vector<128x128xi1>, vector<128x128xf32>
    %c0_13 = arith.constant 0 : index
    %c0_14 = arith.constant 0 : index
    %23 = vector.load %arg8[%c0_13, %c0_14] : memref<128x128xf32, #tpu.memory_space<vmem>>, vector<128x128xf32>
    %c0_15 = arith.constant 0 : index
    %c0_16 = arith.constant 0 : index
    %24 = vector.load %arg9[%c0_15, %c0_16] : memref<128x128xf32, #tpu.memory_space<vmem>>, vector<128x128xf32>
    %25 = arith.maximumf %23, %20 : vector<128x128xf32>
    %26 = arith.minimumf %24, %22 : vector<128x128xf32>
    %c0_17 = arith.constant 0 : index
    %c0_18 = arith.constant 0 : index
    %27 = vector.load %arg8[%c0_17, %c0_18] : memref<128x128xf32, #tpu.memory_space<vmem>>, vector<128x128xf32>
    tpu.vector_store %arg8[%c0_17, %c0_18], %25 {strides = array<i32>} : memref<128x128xf32, #tpu.memory_space<vmem>>, vector<128x128xf32>,
    %c0_19 = arith.constant 0 : index
    %c0_20 = arith.constant 0 : index
    %28 = vector.load %arg9[%c0_19, %c0_20] : memref<128x128xf32, #tpu.memory_space<vmem>>, vector<128x128xf32>
    tpu.vector_store %arg9[%c0_19, %c0_20], %26 {strides = array<i32>} : memref<128x128xf32, #tpu.memory_space<vmem>>, vector<128x128xf32>,
    %c0_i32_21 = arith.constant 0 : i32
    %29 = arith.cmpi eq, %arg1, %c0_i32_21 : i32
    %30 = arith.extui %29 : i1 to i32
    %c0_i32_22 = arith.constant 0 : i32
    %31 = arith.cmpi ne, %30, %c0_i32_22 : i32
    scf.if %31 {
      %c0_23 = arith.constant 0 : index
      %c0_24 = arith.constant 0 : index
      %32 = vector.load %arg4[%c0_23, %c0_24] : memref<128x1xf32, #tpu.memory_space<vmem>>, vector<128x1xf32>
      %c0_25 = arith.constant 0 : index
      %c0_26 = arith.constant 0 : index
      %33 = vector.load %arg8[%c0_25, %c0_26] : memref<128x128xf32, #tpu.memory_space<vmem>>, vector<128x128xf32>
      %cst_27 = arith.constant dense<0xFF800000> : vector<128xf32>
      %34 = vector.multi_reduction <maximumf>, %33, %cst_27 [1] : vector<128x128xf32> to vector<128xf32>
      %35 = vector.shape_cast %34 : vector<128xf32> to vector<128x1xf32>
      %c0_28 = arith.constant 0 : index
      %c0_29 = arith.constant 0 : index
      %36 = vector.load %arg9[%c0_28, %c0_29] : memref<128x128xf32, #tpu.memory_space<vmem>>, vector<128x128xf32>
      %cst_30 = arith.constant dense<0x7F800000> : vector<128xf32>
      %37 = vector.multi_reduction <minimumf>, %36, %cst_30 [1] : vector<128x128xf32> to vector<128xf32>
      %38 = vector.shape_cast %37 : vector<128xf32> to vector<128x1xf32>
      %cst_31 = arith.constant 2.000000e+00 : f32
      %39 = vector.broadcast %cst_31 : f32 to vector<128x1xf32>
      %40 = arith.mulf %39, %35 : vector<128x1xf32>
      %41 = arith.addf %40, %32 : vector<128x1xf32>
      %cst_32 = arith.constant 9.99999996E-13 : f32
      %42 = vector.broadcast %cst_32 : f32 to vector<128x1xf32>
      %43 = arith.maximumf %41, %42 : vector<128x1xf32>
      %44 = math.sqrt %43 : vector<128x1xf32>
      %cst_33 = arith.constant 2.000000e+00 : f32
      %45 = vector.broadcast %cst_33 : f32 to vector<128x1xf32>
      %46 = arith.mulf %45, %38 : vector<128x1xf32>
      %47 = arith.addf %46, %32 : vector<128x1xf32>
      %cst_34 = arith.constant 9.99999996E-13 : f32
      %48 = vector.broadcast %cst_34 : f32 to vector<128x1xf32>
      %49 = arith.maximumf %47, %48 : vector<128x1xf32>
      %50 = math.sqrt %49 : vector<128x1xf32>
      %51 = arith.subf %44, %50 : vector<128x1xf32>
      %cst_35 = arith.constant 3.000000e-01 : f32
      %52 = vector.broadcast %cst_35 : f32 to vector<128x1xf32>
      %53 = arith.addf %51, %52 : vector<128x1xf32>
      %cst_36 = arith.constant 0.000000e+00 : f32
      %54 = vector.broadcast %cst_36 : f32 to vector<128x1xf32>
      %55 = arith.maximumf %53, %54 : vector<128x1xf32>
      %cst_37 = arith.constant -1.000000e+00 : f32
      %56 = vector.broadcast %cst_37 : f32 to vector<128x1xf32>
      %57 = arith.cmpf one, %8, %56 : vector<128x1xf32>
      %58 = arith.extui %57 : vector<128x1xi1> to vector<128x1xi32>
      %59 = arith.sitofp %58 : vector<128x1xi32> to vector<128x1xf32>
      %60 = arith.mulf %55, %59 : vector<128x1xf32>
      %c0_38 = arith.constant 0 : index
      %c0_39 = arith.constant 0 : index
      %61 = vector.load %arg7[%c0_38, %c0_39] : memref<128x1xf32, #tpu.memory_space<vmem>>, vector<128x1xf32>
      tpu.vector_store %arg7[%c0_38, %c0_39], %60 {strides = array<i32>} : memref<128x1xf32, #tpu.memory_space<vmem>>, vector<128x1xf32>,
    } else {
    }
    return
  }
  func.func @transform_0(%arg0: i32, %arg1: i32) -> (i32, i32) {
    %c0_i32 = arith.constant 0 : i32
    %c0_i32_0 = arith.constant 0 : i32
    return %arg0, %c0_i32 : i32, i32
  }
  func.func @transform_1(%arg0: i32, %arg1: i32) -> (i32, i32) {
    %c0_i32 = arith.constant 0 : i32
    %c0_i32_0 = arith.constant 0 : i32
    return %c0_i32, %arg1 : i32, i32
  }
  func.func @transform_2(%arg0: i32, %arg1: i32) -> (i32, i32) {
    %c0_i32 = arith.constant 0 : i32
    %c0_i32_0 = arith.constant 0 : i32
    return %arg0, %c0_i32 : i32, i32
  }
  func.func @transform_3(%arg0: i32, %arg1: i32) -> (i32, i32) {
    %c0_i32 = arith.constant 0 : i32
    %c0_i32_0 = arith.constant 0 : i32
    return %arg0, %c0_i32 : i32, i32
  }
  func.func @transform_4(%arg0: i32, %arg1: i32) -> (i32, i32) {
    %c0_i32 = arith.constant 0 : i32
    %c0_i32_0 = arith.constant 0 : i32
    return %c0_i32, %arg1 : i32, i32
  }
  func.func @transform_5(%arg0: i32, %arg1: i32) -> (i32, i32) {
    %c0_i32 = arith.constant 0 : i32
    %c0_i32_0 = arith.constant 0 : i32
    return %arg0, %c0_i32 : i32, i32
  }
}

</mosaic_0001>

<llo_original>
// kernel: tpu_custom_call.1
$region0: #{tpu_custom_call.1}
  #allocation0 [shape = 'u32[]', space=smem, size = 0x4, offset = 0x4, fixed_abs, tag = 'smem constant byte address 0x4 - core index']
  #allocation1 [shape = 'u32[72,128]{1,0:T(1,128)}', space=vmem, size = 0x9000, scoped, tag = 'internal scratch']
  #allocation2 [shape = 'f32[128,128]{1,0:T(8,128)}', space=vmem, size = 0x10000, scoped, tag = 'scratch operand']
  #allocation3 [shape = 'f32[128,128]{1,0:T(8,128)}', space=vmem, size = 0x10000, scoped, tag = 'scratch operand']
  %s0 = inlined_call_operand.vmem [shape: f32[128,128], index: 0, kind: input, shape index: {}]
  %s1 = inlined_call_operand.vmem [shape: f32[128,128], index: 1, kind: input, shape index: {}]
  %s2 = inlined_call_operand.vmem [shape: f32[128,1], index: 2, kind: input, shape index: {}]
  %s3 = inlined_call_operand.vmem [shape: f32[128,1], index: 3, kind: input, shape index: {}]
  %s4 = inlined_call_operand.vmem [shape: f32[2,128], index: 4, kind: input, shape index: {}]
  %s5 = inlined_call_operand.vmem [shape: f32[128,1], index: 5, kind: output, shape index: {}]
  %s6 = sld [smem:[#allocation0]]
  $region38: #{tpu_custom_call.1} parent=0
    _
  %s8 = ssub.s32 1, %s6
  %s9 = scalar_select 0, %s8, %s6
  // Predicated region
  $region2: #{tpu_custom_call.1} parent=0 // pred_check
    _
  $region3: #{tpu_custom_call.1} parent=0 // pred_check_branch
    %11 = sbr.rel (0) target = $region5
  $region4: #{tpu_custom_call.1} parent=0 // pred_region
    _
  $region5: #{tpu_custom_call.1} parent=0 // pred_fallthru
    _
  // Predicated region
  $region6: #{tpu_custom_call.1} parent=0 // pred_check
    _
  $region7: #{tpu_custom_call.1} parent=0 // pred_check_branch
    %13 = sbr.rel (0) target = $region9
  $region8: #{tpu_custom_call.1} parent=0 // pred_region
    _
  $region9: #{tpu_custom_call.1} parent=0 // pred_fallthru
    _
  // Predicated region
  $region10: #{tpu_custom_call.1} parent=0 // pred_check
    _
  $region11: #{tpu_custom_call.1} parent=0 // pred_check_branch
    %15 = sbr.rel (0) target = $region13
  $region12: #{tpu_custom_call.1} parent=0 // pred_region
    _
  $region13: #{tpu_custom_call.1} parent=0 // pred_fallthru
    _
  // Predicated region
  $region14: #{tpu_custom_call.1} parent=0 // pred_check
    _
  $region15: #{tpu_custom_call.1} parent=0 // pred_check_branch
    %17 = sbr.rel (0) target = $region17
  $region16: #{tpu_custom_call.1} parent=0 // pred_region
    _
  $region17: #{tpu_custom_call.1} parent=0 // pred_fallthru
    _
  // Predicated region
  $region18: #{tpu_custom_call.1} parent=0 // pred_check
    _
  $region19: #{tpu_custom_call.1} parent=0 // pred_check_branch
    %19 = sbr.rel (0) target = $region21
  $region20: #{tpu_custom_call.1} parent=0 // pred_region
    _
  $region21: #{tpu_custom_call.1} parent=0 // pred_fallthru
    _
  %p20 = scmp.eq.s32.totalorder 0, 0
  // Predicated region
  $region22: #{tpu_custom_call.1} parent=0 // pred_check
    %p21 = pneg %p20
  $region23: #{tpu_custom_call.1} parent=0 // pred_check_branch
    %23 = sbr.rel (%p21) target = $region25
  $region24: #{tpu_custom_call.1} parent=0 // pred_region
    %24 = vst [vmem:[#allocation2] sm:$0xff] -1e+30
    %25 = vst [vmem:[#allocation2 + $0x8] sm:$0xff] -1e+30
    %26 = vst [vmem:[#allocation2 + $0x10] sm:$0xff] -1e+30
    %27 = vst [vmem:[#allocation2 + $0x18] sm:$0xff] -1e+30
    %28 = vst [vmem:[#allocation2 + $0x20] sm:$0xff] -1e+30
    %29 = vst [vmem:[#allocation2 + $0x28] sm:$0xff] -1e+30
    %30 = vst [vmem:[#allocation2 + $0x30] sm:$0xff] -1e+30
    %31 = vst [vmem:[#allocation2 + $0x38] sm:$0xff] -1e+30
    %32 = vst [vmem:[#allocation2 + $0x40] sm:$0xff] -1e+30
    %33 = vst [vmem:[#allocation2 + $0x48] sm:$0xff] -1e+30
    %34 = vst [vmem:[#allocation2 + $0x50] sm:$0xff] -1e+30
    %35 = vst [vmem:[#allocation2 + $0x58] sm:$0xff] -1e+30
    %36 = vst [vmem:[#allocation2 + $0x60] sm:$0xff] -1e+30
    %37 = vst [vmem:[#allocation2 + $0x68] sm:$0xff] -1e+30
    %38 = vst [vmem:[#allocation2 + $0x70] sm:$0xff] -1e+30
    %39 = vst [vmem:[#allocation2 + $0x78] sm:$0xff] -1e+30
    %40 = vst [vmem:[#allocation3] sm:$0xff] 1e+30
    %41 = vst [vmem:[#allocation3 + $0x8] sm:$0xff] 1e+30
    %42 = vst [vmem:[#allocation3 + $0x10] sm:$0xff] 1e+30
    %43 = vst [vmem:[#allocation3 + $0x18] sm:$0xff] 1e+30
    %44 = vst [vmem:[#allocation3 + $0x20] sm:$0xff] 1e+30
    %45 = vst [vmem:[#allocation3 + $0x28] sm:$0xff] 1e+30
    %46 = vst [vmem:[#allocation3 + $0x30] sm:$0xff] 1e+30
    %47 = vst [vmem:[#allocation3 + $0x38] sm:$0xff] 1e+30
    %48 = vst [vmem:[#allocation3 + $0x40] sm:$0xff] 1e+30
    %49 = vst [vmem:[#allocation3 + $0x48] sm:$0xff] 1e+30
    %50 = vst [vmem:[#allocation3 + $0x50] sm:$0xff] 1e+30
    %51 = vst [vmem:[#allocation3 + $0x58] sm:$0xff] 1e+30
    %52 = vst [vmem:[#allocation3 + $0x60] sm:$0xff] 1e+30
    %53 = vst [vmem:[#allocation3 + $0x68] sm:$0xff] 1e+30
    %54 = vst [vmem:[#allocation3 + $0x70] sm:$0xff] 1e+30
    %55 = vst [vmem:[#allocation3 + $0x78] sm:$0xff] 1e+30
  $region25: #{tpu_custom_call.1} parent=0 // pred_fallthru
    _
  %v56 = vld [vmem:[%s0] sm:$0xff]
  %v57 = vld [vmem:[%s0 + $0x8] sm:$0xff]
  %v58 = vld [vmem:[%s0 + $0x10] sm:$0xff]
  %v59 = vld [vmem:[%s0 + $0x18] sm:$0xff]
  %v60 = vld [vmem:[%s0 + $0x20] sm:$0xff]
  %v61 = vld [vmem:[%s0 + $0x28] sm:$0xff]
  %v62 = vld [vmem:[%s0 + $0x30] sm:$0xff]
  %v63 = vld [vmem:[%s0 + $0x38] sm:$0xff]
  %v64 = vld [vmem:[%s0 + $0x40] sm:$0xff]
  %v65 = vld [vmem:[%s0 + $0x48] sm:$0xff]
  %v66 = vld [vmem:[%s0 + $0x50] sm:$0xff]
  %v67 = vld [vmem:[%s0 + $0x58] sm:$0xff]
  %v68 = vld [vmem:[%s0 + $0x60] sm:$0xff]
  %v69 = vld [vmem:[%s0 + $0x68] sm:$0xff]
  %v70 = vld [vmem:[%s0 + $0x70] sm:$0xff]
  %v71 = vld [vmem:[%s0 + $0x78] sm:$0xff]
  %v72 = vld [vmem:[%s1] sm:$0xff]
  %v73 = vld [vmem:[%s1 + $0x8] sm:$0xff]
  %v74 = vld [vmem:[%s1 + $0x10] sm:$0xff]
  %v75 = vld [vmem:[%s1 + $0x18] sm:$0xff]
  %v76 = vld [vmem:[%s1 + $0x20] sm:$0xff]
  %v77 = vld [vmem:[%s1 + $0x28] sm:$0xff]
  %v78 = vld [vmem:[%s1 + $0x30] sm:$0xff]
  %v79 = vld [vmem:[%s1 + $0x38] sm:$0xff]
  %v80 = vld [vmem:[%s1 + $0x40] sm:$0xff]
  %v81 = vld [vmem:[%s1 + $0x48] sm:$0xff]
  %v82 = vld [vmem:[%s1 + $0x50] sm:$0xff]
  %v83 = vld [vmem:[%s1 + $0x58] sm:$0xff]
  %v84 = vld [vmem:[%s1 + $0x60] sm:$0xff]
  %v85 = vld [vmem:[%s1 + $0x68] sm:$0xff]
  %v86 = vld [vmem:[%s1 + $0x70] sm:$0xff]
  %v87 = vld [vmem:[%s1 + $0x78] sm:$0xff]
  %88 = vmatpush.msra.mxu0 %v87
  %89 = vmatpush.msra.mxu0 %v86
  %90 = vmatpush.msra.mxu0 %v85
  %91 = vmatpush.msra.mxu0 %v84
  %92 = vmatpush.msra.mxu0 %v83
  %93 = vmatpush.msra.mxu0 %v82
  %94 = vmatpush.msra.mxu0 %v81
  %95 = vmatpush.msra.mxu0 %v80
  %96 = vmatpush.msra.mxu0 %v79
  %97 = vmatpush.msra.mxu0 %v78
  %98 = vmatpush.msra.mxu0 %v77
  %99 = vmatpush.msra.mxu0 %v76
  %100 = vmatpush.msra.mxu0 %v75
  %101 = vmatpush.msra.mxu0 %v74
  %102 = vmatpush.msra.mxu0 %v73
  %103 = vmatpush.msra.mxu0 %v72
  %104 = vmatmul.f32.gmra.mxu0 %v56
  %v105 = vpop.f32.mrf.mxu0
  %v106 = vadd.f32 0.0, %v105
  %107 = vmatmul.f32.gmra.mxu0 %v57
  %v108 = vpop.f32.mrf.mxu0
  %v109 = vadd.f32 0.0, %v108
  %110 = vmatmul.f32.gmra.mxu0 %v58
  %v111 = vpop.f32.mrf.mxu0
  %v112 = vadd.f32 0.0, %v111
  %113 = vmatmul.f32.gmra.mxu0 %v59
  %v114 = vpop.f32.mrf.mxu0
  %v115 = vadd.f32 0.0, %v114
  %116 = vmatmul.f32.gmra.mxu0 %v60
  %v117 = vpop.f32.mrf.mxu0
  %v118 = vadd.f32 0.0, %v117
  %119 = vmatmul.f32.gmra.mxu0 %v61
  %v120 = vpop.f32.mrf.mxu0
  %v121 = vadd.f32 0.0, %v120
  %122 = vmatmul.f32.gmra.mxu0 %v62
  %v123 = vpop.f32.mrf.mxu0
  %v124 = vadd.f32 0.0, %v123
  %125 = vmatmul.f32.gmra.mxu0 %v63
  %v126 = vpop.f32.mrf.mxu0
  %v127 = vadd.f32 0.0, %v126
  %128 = vmatmul.f32.gmra.mxu0 %v64
  %v129 = vpop.f32.mrf.mxu0
  %v130 = vadd.f32 0.0, %v129
  %131 = vmatmul.f32.gmra.mxu0 %v65
  %v132 = vpop.f32.mrf.mxu0
  %v133 = vadd.f32 0.0, %v132
  %134 = vmatmul.f32.gmra.mxu0 %v66
  %v135 = vpop.f32.mrf.mxu0
  %v136 = vadd.f32 0.0, %v135
  %137 = vmatmul.f32.gmra.mxu0 %v67
  %v138 = vpop.f32.mrf.mxu0
  %v139 = vadd.f32 0.0, %v138
  %140 = vmatmul.f32.gmra.mxu0 %v68
  %v141 = vpop.f32.mrf.mxu0
  %v142 = vadd.f32 0.0, %v141
  %143 = vmatmul.f32.gmra.mxu0 %v69
  %v144 = vpop.f32.mrf.mxu0
  %v145 = vadd.f32 0.0, %v144
  %146 = vmatmul.f32.gmra.mxu0 %v70
  %v147 = vpop.f32.mrf.mxu0
  %v148 = vadd.f32 0.0, %v147
  %149 = vmatmul.f32.gmra.mxu0 %v71
  %v150 = vpop.f32.mrf.mxu0
  %v151 = vadd.f32 0.0, %v150
  %152 = vdwg.mxu0
  %v153 = vld [vmem:[%s4] sm:$0x1]
  %v154 = vld [vmem:[%s4 + $0x1] sm:$0x1]
  %v155 = vld [vmem:[%s3] sm:$0xff]
  %v156 = vld [vmem:[%s3 + $0x8] sm:$0xff]
  %v157 = vld [vmem:[%s3 + $0x10] sm:$0xff]
  %v158 = vld [vmem:[%s3 + $0x18] sm:$0xff]
  %v159 = vld [vmem:[%s3 + $0x20] sm:$0xff]
  %v160 = vld [vmem:[%s3 + $0x28] sm:$0xff]
  %v161 = vld [vmem:[%s3 + $0x30] sm:$0xff]
  %v162 = vld [vmem:[%s3 + $0x38] sm:$0xff]
  %v163 = vld [vmem:[%s3 + $0x40] sm:$0xff]
  %v164 = vld [vmem:[%s3 + $0x48] sm:$0xff]
  %v165 = vld [vmem:[%s3 + $0x50] sm:$0xff]
  %v166 = vld [vmem:[%s3 + $0x58] sm:$0xff]
  %v167 = vld [vmem:[%s3 + $0x60] sm:$0xff]
  %v168 = vld [vmem:[%s3 + $0x68] sm:$0xff]
  %v169 = vld [vmem:[%s3 + $0x70] sm:$0xff]
  %v170 = vld [vmem:[%s3 + $0x78] sm:$0xff]
  %v171 = vperm.slane %v153, 0
  %v172 = vsub.f32 %v171, %v106
  %v173 = vsub.f32 %v171, %v109
  %v174 = vsub.f32 %v171, %v112
  %v175 = vsub.f32 %v171, %v115
  %v176 = vsub.f32 %v171, %v118
  %v177 = vsub.f32 %v171, %v121
  %v178 = vsub.f32 %v171, %v124
  %v179 = vsub.f32 %v171, %v127
  %v180 = vsub.f32 %v171, %v130
  %v181 = vsub.f32 %v171, %v133
  %v182 = vsub.f32 %v171, %v136
  %v183 = vsub.f32 %v171, %v139
  %v184 = vsub.f32 %v171, %v142
  %v185 = vsub.f32 %v171, %v145
  %v186 = vsub.f32 %v171, %v148
  %v187 = vsub.f32 %v171, %v151
  %189 = vset.pattern.permute.xlu0 0
  %190 = vperm.xlu0 %189, %v155
  %v191 = vpop.permute.xlu0 %190
  %194 = vset.pattern.permute.xlu0 0
  %195 = vperm.xlu0 %194, %v156
  %v196 = vpop.permute.xlu0 %195
  %199 = vset.pattern.permute.xlu0 0
  %200 = vperm.xlu0 %199, %v157
  %v201 = vpop.permute.xlu0 %200
  %204 = vset.pattern.permute.xlu0 0
  %205 = vperm.xlu0 %204, %v158
  %v206 = vpop.permute.xlu0 %205
  %209 = vset.pattern.permute.xlu0 0
  %210 = vperm.xlu0 %209, %v159
  %v211 = vpop.permute.xlu0 %210
  %214 = vset.pattern.permute.xlu0 0
  %215 = vperm.xlu0 %214, %v160
  %v216 = vpop.permute.xlu0 %215
  %219 = vset.pattern.permute.xlu0 0
  %220 = vperm.xlu0 %219, %v161
  %v221 = vpop.permute.xlu0 %220
  %224 = vset.pattern.permute.xlu0 0
  %225 = vperm.xlu0 %224, %v162
  %v226 = vpop.permute.xlu0 %225
  %229 = vset.pattern.permute.xlu0 0
  %230 = vperm.xlu0 %229, %v163
  %v231 = vpop.permute.xlu0 %230
  %234 = vset.pattern.permute.xlu0 0
  %235 = vperm.xlu0 %234, %v164
  %v236 = vpop.permute.xlu0 %235
  %239 = vset.pattern.permute.xlu0 0
  %240 = vperm.xlu0 %239, %v165
  %v241 = vpop.permute.xlu0 %240
  %244 = vset.pattern.permute.xlu0 0
  %245 = vperm.xlu0 %244, %v166
  %v246 = vpop.permute.xlu0 %245
  %249 = vset.pattern.permute.xlu0 0
  %250 = vperm.xlu0 %249, %v167
  %v251 = vpop.permute.xlu0 %250
  %254 = vset.pattern.permute.xlu0 0
  %255 = vperm.xlu0 %254, %v168
  %v256 = vpop.permute.xlu0 %255
  %259 = vset.pattern.permute.xlu0 0
  %260 = vperm.xlu0 %259, %v169
  %v261 = vpop.permute.xlu0 %260
  %264 = vset.pattern.permute.xlu0 0
  %265 = vperm.xlu0 %264, %v170
  %v266 = vpop.permute.xlu0 %265
  %v268 = vperm.slane %v154, 0
  %vm269 = vcmp.eq.f32.partialorder %v191, %v268
  %vm270 = vcmp.eq.f32.partialorder %v196, %v268
  %vm271 = vcmp.eq.f32.partialorder %v201, %v268
  %vm272 = vcmp.eq.f32.partialorder %v206, %v268
  %vm273 = vcmp.eq.f32.partialorder %v211, %v268
  %vm274 = vcmp.eq.f32.partialorder %v216, %v268
  %vm275 = vcmp.eq.f32.partialorder %v221, %v268
  %vm276 = vcmp.eq.f32.partialorder %v226, %v268
  %vm277 = vcmp.eq.f32.partialorder %v231, %v268
  %vm278 = vcmp.eq.f32.partialorder %v236, %v268
  %vm279 = vcmp.eq.f32.partialorder %v241, %v268
  %vm280 = vcmp.eq.f32.partialorder %v246, %v268
  %vm281 = vcmp.eq.f32.partialorder %v251, %v268
  %vm282 = vcmp.eq.f32.partialorder %v256, %v268
  %vm283 = vcmp.eq.f32.partialorder %v261, %v268
  %vm284 = vcmp.eq.f32.partialorder %v266, %v268
  %vm285 = vmxor %vm269, 1
  %vm286 = vmxor %vm270, 1
  %vm287 = vmxor %vm271, 1
  %vm288 = vmxor %vm272, 1
  %vm289 = vmxor %vm273, 1
  %vm290 = vmxor %vm274, 1
  %vm291 = vmxor %vm275, 1
  %vm292 = vmxor %vm276, 1
  %vm293 = vmxor %vm277, 1
  %vm294 = vmxor %vm278, 1
  %vm295 = vmxor %vm279, 1
  %vm296 = vmxor %vm280, 1
  %vm297 = vmxor %vm281, 1
  %vm298 = vmxor %vm282, 1
  %vm299 = vmxor %vm283, 1
  %vm300 = vmxor %vm284, 1
  %vm301 = vcmp.ne.f32.partialorder %v154, -1.0
  %v302 = vsel %vm301, 1, 0
  %v303 = vperm.slane %v302, 0
  %vm304 = vcmp.eq.s32.totalorder %v303, 1
  %vm305 = vmand %vm285, %vm304
  %vm306 = vmand %vm286, %vm304
  %vm307 = vmand %vm287, %vm304
  %vm308 = vmand %vm288, %vm304
  %vm309 = vmand %vm289, %vm304
  %vm310 = vmand %vm290, %vm304
  %vm311 = vmand %vm291, %vm304
  %vm312 = vmand %vm292, %vm304
  %vm313 = vmand %vm293, %vm304
  %vm314 = vmand %vm294, %vm304
  %vm315 = vmand %vm295, %vm304
  %vm316 = vmand %vm296, %vm304
  %vm317 = vmand %vm297, %vm304
  %vm318 = vmand %vm298, %vm304
  %vm319 = vmand %vm299, %vm304
  %vm320 = vmand %vm300, %vm304
  %v321 = vsel %vm269, %v172, -1e+30
  %v322 = vsel %vm270, %v173, -1e+30
  %v323 = vsel %vm271, %v174, -1e+30
  %v324 = vsel %vm272, %v175, -1e+30
  %v325 = vsel %vm273, %v176, -1e+30
  %v326 = vsel %vm274, %v177, -1e+30
  %v327 = vsel %vm275, %v178, -1e+30
  %v328 = vsel %vm276, %v179, -1e+30
  %v329 = vsel %vm277, %v180, -1e+30
  %v330 = vsel %vm278, %v181, -1e+30
  %v331 = vsel %vm279, %v182, -1e+30
  %v332 = vsel %vm280, %v183, -1e+30
  %v333 = vsel %vm281, %v184, -1e+30
  %v334 = vsel %vm282, %v185, -1e+30
  %v335 = vsel %vm283, %v186, -1e+30
  %v336 = vsel %vm284, %v187, -1e+30
  %v337 = vsel %vm305, %v172, 1e+30
  %v338 = vsel %vm306, %v173, 1e+30
  %v339 = vsel %vm307, %v174, 1e+30
  %v340 = vsel %vm308, %v175, 1e+30
  %v341 = vsel %vm309, %v176, 1e+30
  %v342 = vsel %vm310, %v177, 1e+30
  %v343 = vsel %vm311, %v178, 1e+30
  %v344 = vsel %vm312, %v179, 1e+30
  %v345 = vsel %vm313, %v180, 1e+30
  %v346 = vsel %vm314, %v181, 1e+30
  %v347 = vsel %vm315, %v182, 1e+30
  %v348 = vsel %vm316, %v183, 1e+30
  %v349 = vsel %vm317, %v184, 1e+30
  %v350 = vsel %vm318, %v185, 1e+30
  %v351 = vsel %vm319, %v186, 1e+30
  %v352 = vsel %vm320, %v187, 1e+30
  %v353 = vld [vmem:[#allocation2] sm:$0xff]
  %v354 = vld [vmem:[#allocation2 + $0x8] sm:$0xff]
  %v355 = vld [vmem:[#allocation2 + $0x10] sm:$0xff]
  %v356 = vld [vmem:[#allocation2 + $0x18] sm:$0xff]
  %v357 = vld [vmem:[#allocation2 + $0x20] sm:$0xff]
  %v358 = vld [vmem:[#allocation2 + $0x28] sm:$0xff]
  %v359 = vld [vmem:[#allocation2 + $0x30] sm:$0xff]
  %v360 = vld [vmem:[#allocation2 + $0x38] sm:$0xff]
  %v361 = vld [vmem:[#allocation2 + $0x40] sm:$0xff]
  %v362 = vld [vmem:[#allocation2 + $0x48] sm:$0xff]
  %v363 = vld [vmem:[#allocation2 + $0x50] sm:$0xff]
  %v364 = vld [vmem:[#allocation2 + $0x58] sm:$0xff]
  %v365 = vld [vmem:[#allocation2 + $0x60] sm:$0xff]
  %v366 = vld [vmem:[#allocation2 + $0x68] sm:$0xff]
  %v367 = vld [vmem:[#allocation2 + $0x70] sm:$0xff]
  %v368 = vld [vmem:[#allocation2 + $0x78] sm:$0xff]
  %v369 = vld [vmem:[#allocation3] sm:$0xff]
  %v370 = vld [vmem:[#allocation3 + $0x8] sm:$0xff]
  %v371 = vld [vmem:[#allocation3 + $0x10] sm:$0xff]
  %v372 = vld [vmem:[#allocation3 + $0x18] sm:$0xff]
  %v373 = vld [vmem:[#allocation3 + $0x20] sm:$0xff]
  %v374 = vld [vmem:[#allocation3 + $0x28] sm:$0xff]
  %v375 = vld [vmem:[#allocation3 + $0x30] sm:$0xff]
  %v376 = vld [vmem:[#allocation3 + $0x38] sm:$0xff]
  %v377 = vld [vmem:[#allocation3 + $0x40] sm:$0xff]
  %v378 = vld [vmem:[#allocation3 + $0x48] sm:$0xff]
  %v379 = vld [vmem:[#allocation3 + $0x50] sm:$0xff]
  %v380 = vld [vmem:[#allocation3 + $0x58] sm:$0xff]
  %v381 = vld [vmem:[#allocation3 + $0x60] sm:$0xff]
  %v382 = vld [vmem:[#allocation3 + $0x68] sm:$0xff]
  %v383 = vld [vmem:[#allocation3 + $0x70] sm:$0xff]
  %v384 = vld [vmem:[#allocation3 + $0x78] sm:$0xff]
  %v385 = vmax.f32 %v353, %v321
  %v386 = vmax.f32 %v354, %v322
  %v387 = vmax.f32 %v355, %v323
  %v388 = vmax.f32 %v356, %v324
  %v389 = vmax.f32 %v357, %v325
  %v390 = vmax.f32 %v358, %v326
  %v391 = vmax.f32 %v359, %v327
  %v392 = vmax.f32 %v360, %v328
  %v393 = vmax.f32 %v361, %v329
  %v394 = vmax.f32 %v362, %v330
  %v395 = vmax.f32 %v363, %v331
  %v396 = vmax.f32 %v364, %v332
  %v397 = vmax.f32 %v365, %v333
  %v398 = vmax.f32 %v366, %v334
  %v399 = vmax.f32 %v367, %v335
  %v400 = vmax.f32 %v368, %v336
  %v401 = vmin.f32 %v369, %v337
  %v402 = vmin.f32 %v370, %v338
  %v403 = vmin.f32 %v371, %v339
  %v404 = vmin.f32 %v372, %v340
  %v405 = vmin.f32 %v373, %v341
  %v406 = vmin.f32 %v374, %v342
  %v407 = vmin.f32 %v375, %v343
  %v408 = vmin.f32 %v376, %v344
  %v409 = vmin.f32 %v377, %v345
  %v410 = vmin.f32 %v378, %v346
  %v411 = vmin.f32 %v379, %v347
  %v412 = vmin.f32 %v380, %v348
  %v413 = vmin.f32 %v381, %v349
  %v414 = vmin.f32 %v382, %v350
  %v415 = vmin.f32 %v383, %v351
  %v416 = vmin.f32 %v384, %v352
  %417 = vst [vmem:[#allocation2] sm:$0xff] %v385
  %418 = vst [vmem:[#allocation2 + $0x8] sm:$0xff] %v386
  %419 = vst [vmem:[#allocation2 + $0x10] sm:$0xff] %v387
  %420 = vst [vmem:[#allocation2 + $0x18] sm:$0xff] %v388
  %421 = vst [vmem:[#allocation2 + $0x20] sm:$0xff] %v389
  %422 = vst [vmem:[#allocation2 + $0x28] sm:$0xff] %v390
  %423 = vst [vmem:[#allocation2 + $0x30] sm:$0xff] %v391
  %424 = vst [vmem:[#allocation2 + $0x38] sm:$0xff] %v392
  %425 = vst [vmem:[#allocation2 + $0x40] sm:$0xff] %v393
  %426 = vst [vmem:[#allocation2 + $0x48] sm:$0xff] %v394
  %427 = vst [vmem:[#allocation2 + $0x50] sm:$0xff] %v395
  %428 = vst [vmem:[#allocation2 + $0x58] sm:$0xff] %v396
  %429 = vst [vmem:[#allocation2 + $0x60] sm:$0xff] %v397
  %430 = vst [vmem:[#allocation2 + $0x68] sm:$0xff] %v398
  %431 = vst [vmem:[#allocation2 + $0x70] sm:$0xff] %v399
  %432 = vst [vmem:[#allocation2 + $0x78] sm:$0xff] %v400
  %433 = vst [vmem:[#allocation3] sm:$0xff] %v401
  %434 = vst [vmem:[#allocation3 + $0x8] sm:$0xff] %v402
  %435 = vst [vmem:[#allocation3 + $0x10] sm:$0xff] %v403
  %436 = vst [vmem:[#allocation3 + $0x18] sm:$0xff] %v404
  %437 = vst [vmem:[#allocation3 + $0x20] sm:$0xff] %v405
  %438 = vst [vmem:[#allocation3 + $0x28] sm:$0xff] %v406
  %439 = vst [vmem:[#allocation3 + $0x30] sm:$0xff] %v407
  %440 = vst [vmem:[#allocation3 + $0x38] sm:$0xff] %v408
  %441 = vst [vmem:[#allocation3 + $0x40] sm:$0xff] %v409
  %442 = vst [vmem:[#allocation3 + $0x48] sm:$0xff] %v410
  %443 = vst [vmem:[#allocation3 + $0x50] sm:$0xff] %v411
  %444 = vst [vmem:[#allocation3 + $0x58] sm:$0xff] %v412
  %445 = vst [vmem:[#allocation3 + $0x60] sm:$0xff] %v413
  %446 = vst [vmem:[#allocation3 + $0x68] sm:$0xff] %v414
  %447 = vst [vmem:[#allocation3 + $0x70] sm:$0xff] %v415
  %448 = vst [vmem:[#allocation3 + $0x78] sm:$0xff] %v416
  // Predicated region
  $region26: #{tpu_custom_call.1} parent=0 // pred_check
    %p449 = pneg %p20
  $region27: #{tpu_custom_call.1} parent=0 // pred_check_branch
    %451 = sbr.rel (%p449) target = $region29
  $region28: #{tpu_custom_call.1} parent=0 // pred_region
    %v452 = vld [vmem:[%s2] sm:$0xff]
    %v453 = vld [vmem:[%s2 + $0x8] sm:$0xff]
    %v454 = vld [vmem:[%s2 + $0x10] sm:$0xff]
    %v455 = vld [vmem:[%s2 + $0x18] sm:$0xff]
    %v456 = vld [vmem:[%s2 + $0x20] sm:$0xff]
    %v457 = vld [vmem:[%s2 + $0x28] sm:$0xff]
    %v458 = vld [vmem:[%s2 + $0x30] sm:$0xff]
    %v459 = vld [vmem:[%s2 + $0x38] sm:$0xff]
    %v460 = vld [vmem:[%s2 + $0x40] sm:$0xff]
    %v461 = vld [vmem:[%s2 + $0x48] sm:$0xff]
    %v462 = vld [vmem:[%s2 + $0x50] sm:$0xff]
    %v463 = vld [vmem:[%s2 + $0x58] sm:$0xff]
    %v464 = vld [vmem:[%s2 + $0x60] sm:$0xff]
    %v465 = vld [vmem:[%s2 + $0x68] sm:$0xff]
    %v466 = vld [vmem:[%s2 + $0x70] sm:$0xff]
    %v467 = vld [vmem:[%s2 + $0x78] sm:$0xff]
    %v468 = vld [vmem:[#allocation2] sm:$0xff]
    %v469 = vld [vmem:[#allocation2 + $0x8] sm:$0xff]
    %v470 = vld [vmem:[#allocation2 + $0x10] sm:$0xff]
    %v471 = vld [vmem:[#allocation2 + $0x18] sm:$0xff]
    %v472 = vld [vmem:[#allocation2 + $0x20] sm:$0xff]
    %v473 = vld [vmem:[#allocation2 + $0x28] sm:$0xff]
    %v474 = vld [vmem:[#allocation2 + $0x30] sm:$0xff]
    %v475 = vld [vmem:[#allocation2 + $0x38] sm:$0xff]
    %v476 = vld [vmem:[#allocation2 + $0x40] sm:$0xff]
    %v477 = vld [vmem:[#allocation2 + $0x48] sm:$0xff]
    %v478 = vld [vmem:[#allocation2 + $0x50] sm:$0xff]
    %v479 = vld [vmem:[#allocation2 + $0x58] sm:$0xff]
    %v480 = vld [vmem:[#allocation2 + $0x60] sm:$0xff]
    %v481 = vld [vmem:[#allocation2 + $0x68] sm:$0xff]
    %v482 = vld [vmem:[#allocation2 + $0x70] sm:$0xff]
    %v483 = vld [vmem:[#allocation2 + $0x78] sm:$0xff]
    %484 = vmax.xlane.f32.xlu0 %v468
    %v485 = vpop.xlane.xlu0 %484
    %486 = vmax.xlane.f32.xlu0 %v469
    %v487 = vpop.xlane.xlu0 %486
    %488 = vmax.xlane.f32.xlu0 %v470
    %v489 = vpop.xlane.xlu0 %488
    %490 = vmax.xlane.f32.xlu0 %v471
    %v491 = vpop.xlane.xlu0 %490
    %492 = vmax.xlane.f32.xlu0 %v472
    %v493 = vpop.xlane.xlu0 %492
    %494 = vmax.xlane.f32.xlu0 %v473
    %v495 = vpop.xlane.xlu0 %494
    %496 = vmax.xlane.f32.xlu0 %v474
    %v497 = vpop.xlane.xlu0 %496
    %498 = vmax.xlane.f32.xlu0 %v475
    %v499 = vpop.xlane.xlu0 %498
    %500 = vmax.xlane.f32.xlu0 %v476
    %v501 = vpop.xlane.xlu0 %500
    %502 = vmax.xlane.f32.xlu0 %v477
    %v503 = vpop.xlane.xlu0 %502
    %504 = vmax.xlane.f32.xlu0 %v478
    %v505 = vpop.xlane.xlu0 %504
    %506 = vmax.xlane.f32.xlu0 %v479
    %v507 = vpop.xlane.xlu0 %506
    %508 = vmax.xlane.f32.xlu0 %v480
    %v509 = vpop.xlane.xlu0 %508
    %510 = vmax.xlane.f32.xlu0 %v481
    %v511 = vpop.xlane.xlu0 %510
    %512 = vmax.xlane.f32.xlu0 %v482
    %v513 = vpop.xlane.xlu0 %512
    %514 = vmax.xlane.f32.xlu0 %v483
    %v515 = vpop.xlane.xlu0 %514
    %v516 = vld [vmem:[#allocation3] sm:$0xff]
    %v517 = vld [vmem:[#allocation3 + $0x8] sm:$0xff]
    %v518 = vld [vmem:[#allocation3 + $0x10] sm:$0xff]
    %v519 = vld [vmem:[#allocation3 + $0x18] sm:$0xff]
    %v520 = vld [vmem:[#allocation3 + $0x20] sm:$0xff]
    %v521 = vld [vmem:[#allocation3 + $0x28] sm:$0xff]
    %v522 = vld [vmem:[#allocation3 + $0x30] sm:$0xff]
    %v523 = vld [vmem:[#allocation3 + $0x38] sm:$0xff]
    %v524 = vld [vmem:[#allocation3 + $0x40] sm:$0xff]
    %v525 = vld [vmem:[#allocation3 + $0x48] sm:$0xff]
    %v526 = vld [vmem:[#allocation3 + $0x50] sm:$0xff]
    %v527 = vld [vmem:[#allocation3 + $0x58] sm:$0xff]
    %v528 = vld [vmem:[#allocation3 + $0x60] sm:$0xff]
    %v529 = vld [vmem:[#allocation3 + $0x68] sm:$0xff]
    %v530 = vld [vmem:[#allocation3 + $0x70] sm:$0xff]
    %v531 = vld [vmem:[#allocation3 + $0x78] sm:$0xff]
    %532 = vmin.xlane.f32.xlu0 %v516
    %v533 = vpop.xlane.xlu0 %532
    %534 = vmin.xlane.f32.xlu0 %v517
    %v535 = vpop.xlane.xlu0 %534
    %536 = vmin.xlane.f32.xlu0 %v518
    %v537 = vpop.xlane.xlu0 %536
    %538 = vmin.xlane.f32.xlu0 %v519
    %v539 = vpop.xlane.xlu0 %538
    %540 = vmin.xlane.f32.xlu0 %v520
    %v541 = vpop.xlane.xlu0 %540
    %542 = vmin.xlane.f32.xlu0 %v521
    %v543 = vpop.xlane.xlu0 %542
    %544 = vmin.xlane.f32.xlu0 %v522
    %v545 = vpop.xlane.xlu0 %544
    %546 = vmin.xlane.f32.xlu0 %v523
    %v547 = vpop.xlane.xlu0 %546
    %548 = vmin.xlane.f32.xlu0 %v524
    %v549 = vpop.xlane.xlu0 %548
    %550 = vmin.xlane.f32.xlu0 %v525
    %v551 = vpop.xlane.xlu0 %550
    %552 = vmin.xlane.f32.xlu0 %v526
    %v553 = vpop.xlane.xlu0 %552
    %554 = vmin.xlane.f32.xlu0 %v527
    %v555 = vpop.xlane.xlu0 %554
    %556 = vmin.xlane.f32.xlu0 %v528
    %v557 = vpop.xlane.xlu0 %556
    %558 = vmin.xlane.f32.xlu0 %v529
    %v559 = vpop.xlane.xlu0 %558
    %560 = vmin.xlane.f32.xlu0 %v530
    %v561 = vpop.xlane.xlu0 %560
    %562 = vmin.xlane.f32.xlu0 %v531
    %v563 = vpop.xlane.xlu0 %562
    %v564 = vmul.f32 %v485, 2.0
    %v565 = vmul.f32 %v487, 2.0
    %v566 = vmul.f32 %v489, 2.0
    %v567 = vmul.f32 %v491, 2.0
    %v568 = vmul.f32 %v493, 2.0
    %v569 = vmul.f32 %v495, 2.0
    %v570 = vmul.f32 %v497, 2.0
    %v571 = vmul.f32 %v499, 2.0
    %v572 = vmul.f32 %v501, 2.0
    %v573 = vmul.f32 %v503, 2.0
    %v574 = vmul.f32 %v505, 2.0
    %v575 = vmul.f32 %v507, 2.0
    %v576 = vmul.f32 %v509, 2.0
    %v577 = vmul.f32 %v511, 2.0
    %v578 = vmul.f32 %v513, 2.0
    %v579 = vmul.f32 %v515, 2.0
    %v580 = vadd.f32 %v564, %v452
    %v581 = vadd.f32 %v565, %v453
    %v582 = vadd.f32 %v566, %v454
    %v583 = vadd.f32 %v567, %v455
    %v584 = vadd.f32 %v568, %v456
    %v585 = vadd.f32 %v569, %v457
    %v586 = vadd.f32 %v570, %v458
    %v587 = vadd.f32 %v571, %v459
    %v588 = vadd.f32 %v572, %v460
    %v589 = vadd.f32 %v573, %v461
    %v590 = vadd.f32 %v574, %v462
    %v591 = vadd.f32 %v575, %v463
    %v592 = vadd.f32 %v576, %v464
    %v593 = vadd.f32 %v577, %v465
    %v594 = vadd.f32 %v578, %v466
    %v595 = vadd.f32 %v579, %v467
    %v596 = vmax.f32 %v580, 1e-12
    %v597 = vmax.f32 %v581, 1e-12
    %v598 = vmax.f32 %v582, 1e-12
    %v599 = vmax.f32 %v583, 1e-12
    %v600 = vmax.f32 %v584, 1e-12
    %v601 = vmax.f32 %v585, 1e-12
    %v602 = vmax.f32 %v586, 1e-12
    %v603 = vmax.f32 %v587, 1e-12
    %v604 = vmax.f32 %v588, 1e-12
    %v605 = vmax.f32 %v589, 1e-12
    %v606 = vmax.f32 %v590, 1e-12
    %v607 = vmax.f32 %v591, 1e-12
    %v608 = vmax.f32 %v592, 1e-12
    %v609 = vmax.f32 %v593, 1e-12
    %v610 = vmax.f32 %v594, 1e-12
    %v611 = vmax.f32 %v595, 1e-12
    %v612 = vrsqrt.pop %v596
    %v613 = vmul.f32 %v612, %v596
    %v614 = vmul.f32 %v613, %v612
    %v615 = vmul.f32 0.5, %v614
    %v616 = vsub.f32 1.5, %v615
    %v617 = vmul.f32 %v612, %v616
    %v618 = vmul.f32 %v596, %v617
    %vm619 = vcmp.eq.f32.partialorder %v596, inf
    %v620 = vsel %vm619, %v596, %v618
    %vm621 = vcmp.eq.f32.partialorder %v596, 0.0
    %v622 = vand.u32 %v596, 2147483648
    %v623 = vsel %vm621, %v622, %v620
    %v624 = vrsqrt.pop %v597
    %v625 = vmul.f32 %v624, %v597
    %v626 = vmul.f32 %v625, %v624
    %v627 = vmul.f32 0.5, %v626
    %v628 = vsub.f32 1.5, %v627
    %v629 = vmul.f32 %v624, %v628
    %v630 = vmul.f32 %v597, %v629
    %vm631 = vcmp.eq.f32.partialorder %v597, inf
    %v632 = vsel %vm631, %v597, %v630
    %vm633 = vcmp.eq.f32.partialorder %v597, 0.0
    %v634 = vand.u32 %v597, 2147483648
    %v635 = vsel %vm633, %v634, %v632
    %v636 = vrsqrt.pop %v598
    %v637 = vmul.f32 %v636, %v598
    %v638 = vmul.f32 %v637, %v636
    %v639 = vmul.f32 0.5, %v638
    %v640 = vsub.f32 1.5, %v639
    %v641 = vmul.f32 %v636, %v640
    %v642 = vmul.f32 %v598, %v641
    %vm643 = vcmp.eq.f32.partialorder %v598, inf
    %v644 = vsel %vm643, %v598, %v642
    %vm645 = vcmp.eq.f32.partialorder %v598, 0.0
    %v646 = vand.u32 %v598, 2147483648
    %v647 = vsel %vm645, %v646, %v644
    %v648 = vrsqrt.pop %v599
    %v649 = vmul.f32 %v648, %v599
    %v650 = vmul.f32 %v649, %v648
    %v651 = vmul.f32 0.5, %v650
    %v652 = vsub.f32 1.5, %v651
    %v653 = vmul.f32 %v648, %v652
    %v654 = vmul.f32 %v599, %v653
    %vm655 = vcmp.eq.f32.partialorder %v599, inf
    %v656 = vsel %vm655, %v599, %v654
    %vm657 = vcmp.eq.f32.partialorder %v599, 0.0
    %v658 = vand.u32 %v599, 2147483648
    %v659 = vsel %vm657, %v658, %v656
    %v660 = vrsqrt.pop %v600
    %v661 = vmul.f32 %v660, %v600
    %v662 = vmul.f32 %v661, %v660
    %v663 = vmul.f32 0.5, %v662
    %v664 = vsub.f32 1.5, %v663
    %v665 = vmul.f32 %v660, %v664
    %v666 = vmul.f32 %v600, %v665
    %vm667 = vcmp.eq.f32.partialorder %v600, inf
    %v668 = vsel %vm667, %v600, %v666
    %vm669 = vcmp.eq.f32.partialorder %v600, 0.0
    %v670 = vand.u32 %v600, 2147483648
    %v671 = vsel %vm669, %v670, %v668
    %v672 = vrsqrt.pop %v601
    %v673 = vmul.f32 %v672, %v601
    %v674 = vmul.f32 %v673, %v672
    %v675 = vmul.f32 0.5, %v674
    %v676 = vsub.f32 1.5, %v675
    %v677 = vmul.f32 %v672, %v676
    %v678 = vmul.f32 %v601, %v677
    %vm679 = vcmp.eq.f32.partialorder %v601, inf
    %v680 = vsel %vm679, %v601, %v678
    %vm681 = vcmp.eq.f32.partialorder %v601, 0.0
    %v682 = vand.u32 %v601, 2147483648
    %v683 = vsel %vm681, %v682, %v680
    %v684 = vrsqrt.pop %v602
    %v685 = vmul.f32 %v684, %v602
    %v686 = vmul.f32 %v685, %v684
    %v687 = vmul.f32 0.5, %v686
    %v688 = vsub.f32 1.5, %v687
    %v689 = vmul.f32 %v684, %v688
    %v690 = vmul.f32 %v602, %v689
    %vm691 = vcmp.eq.f32.partialorder %v602, inf
    %v692 = vsel %vm691, %v602, %v690
    %vm693 = vcmp.eq.f32.partialorder %v602, 0.0
    %v694 = vand.u32 %v602, 2147483648
    %v695 = vsel %vm693, %v694, %v692
    %v696 = vrsqrt.pop %v603
    %v697 = vmul.f32 %v696, %v603
    %v698 = vmul.f32 %v697, %v696
    %v699 = vmul.f32 0.5, %v698
    %v700 = vsub.f32 1.5, %v699
    %v701 = vmul.f32 %v696, %v700
    %v702 = vmul.f32 %v603, %v701
    %vm703 = vcmp.eq.f32.partialorder %v603, inf
    %v704 = vsel %vm703, %v603, %v702
    %vm705 = vcmp.eq.f32.partialorder %v603, 0.0
    %v706 = vand.u32 %v603, 2147483648
    %v707 = vsel %vm705, %v706, %v704
    %v708 = vrsqrt.pop %v604
    %v709 = vmul.f32 %v708, %v604
    %v710 = vmul.f32 %v709, %v708
    %v711 = vmul.f32 0.5, %v710
    %v712 = vsub.f32 1.5, %v711
    %v713 = vmul.f32 %v708, %v712
    %v714 = vmul.f32 %v604, %v713
    %vm715 = vcmp.eq.f32.partialorder %v604, inf
    %v716 = vsel %vm715, %v604, %v714
    %vm717 = vcmp.eq.f32.partialorder %v604, 0.0
    %v718 = vand.u32 %v604, 2147483648
    %v719 = vsel %vm717, %v718, %v716
    %v720 = vrsqrt.pop %v605
    %v721 = vmul.f32 %v720, %v605
    %v722 = vmul.f32 %v721, %v720
    %v723 = vmul.f32 0.5, %v722
    %v724 = vsub.f32 1.5, %v723
    %v725 = vmul.f32 %v720, %v724
    %v726 = vmul.f32 %v605, %v725
    %vm727 = vcmp.eq.f32.partialorder %v605, inf
    %v728 = vsel %vm727, %v605, %v726
    %vm729 = vcmp.eq.f32.partialorder %v605, 0.0
    %v730 = vand.u32 %v605, 2147483648
    %v731 = vsel %vm729, %v730, %v728
    %v732 = vrsqrt.pop %v606
    %v733 = vmul.f32 %v732, %v606
    %v734 = vmul.f32 %v733, %v732
    %v735 = vmul.f32 0.5, %v734
    %v736 = vsub.f32 1.5, %v735
    %v737 = vmul.f32 %v732, %v736
    %v738 = vmul.f32 %v606, %v737
    %vm739 = vcmp.eq.f32.partialorder %v606, inf
    %v740 = vsel %vm739, %v606, %v738
    %vm741 = vcmp.eq.f32.partialorder %v606, 0.0
    %v742 = vand.u32 %v606, 2147483648
    %v743 = vsel %vm741, %v742, %v740
    %v744 = vrsqrt.pop %v607
    %v745 = vmul.f32 %v744, %v607
    %v746 = vmul.f32 %v745, %v744
    %v747 = vmul.f32 0.5, %v746
    %v748 = vsub.f32 1.5, %v747
    %v749 = vmul.f32 %v744, %v748
    %v750 = vmul.f32 %v607, %v749
    %vm751 = vcmp.eq.f32.partialorder %v607, inf
    %v752 = vsel %vm751, %v607, %v750
    %vm753 = vcmp.eq.f32.partialorder %v607, 0.0
    %v754 = vand.u32 %v607, 2147483648
    %v755 = vsel %vm753, %v754, %v752
    %v756 = vrsqrt.pop %v608
    %v757 = vmul.f32 %v756, %v608
    %v758 = vmul.f32 %v757, %v756
    %v759 = vmul.f32 0.5, %v758
    %v760 = vsub.f32 1.5, %v759
    %v761 = vmul.f32 %v756, %v760
    %v762 = vmul.f32 %v608, %v761
    %vm763 = vcmp.eq.f32.partialorder %v608, inf
    %v764 = vsel %vm763, %v608, %v762
    %vm765 = vcmp.eq.f32.partialorder %v608, 0.0
    %v766 = vand.u32 %v608, 2147483648
    %v767 = vsel %vm765, %v766, %v764
    %v768 = vrsqrt.pop %v609
    %v769 = vmul.f32 %v768, %v609
    %v770 = vmul.f32 %v769, %v768
    %v771 = vmul.f32 0.5, %v770
    %v772 = vsub.f32 1.5, %v771
    %v773 = vmul.f32 %v768, %v772
    %v774 = vmul.f32 %v609, %v773
    %vm775 = vcmp.eq.f32.partialorder %v609, inf
    %v776 = vsel %vm775, %v609, %v774
    %vm777 = vcmp.eq.f32.partialorder %v609, 0.0
    %v778 = vand.u32 %v609, 2147483648
    %v779 = vsel %vm777, %v778, %v776
    %v780 = vrsqrt.pop %v610
    %v781 = vmul.f32 %v780, %v610
    %v782 = vmul.f32 %v781, %v780
    %v783 = vmul.f32 0.5, %v782
    %v784 = vsub.f32 1.5, %v783
    %v785 = vmul.f32 %v780, %v784
    %v786 = vmul.f32 %v610, %v785
    %vm787 = vcmp.eq.f32.partialorder %v610, inf
    %v788 = vsel %vm787, %v610, %v786
    %vm789 = vcmp.eq.f32.partialorder %v610, 0.0
    %v790 = vand.u32 %v610, 2147483648
    %v791 = vsel %vm789, %v790, %v788
    %v792 = vrsqrt.pop %v611
    %v793 = vmul.f32 %v792, %v611
    %v794 = vmul.f32 %v793, %v792
    %v795 = vmul.f32 0.5, %v794
    %v796 = vsub.f32 1.5, %v795
    %v797 = vmul.f32 %v792, %v796
    %v798 = vmul.f32 %v611, %v797
    %vm799 = vcmp.eq.f32.partialorder %v611, inf
    %v800 = vsel %vm799, %v611, %v798
    %vm801 = vcmp.eq.f32.partialorder %v611, 0.0
    %v802 = vand.u32 %v611, 2147483648
    %v803 = vsel %vm801, %v802, %v800
    %v804 = vmul.f32 %v533, 2.0
    %v805 = vmul.f32 %v535, 2.0
    %v806 = vmul.f32 %v537, 2.0
    %v807 = vmul.f32 %v539, 2.0
    %v808 = vmul.f32 %v541, 2.0
    %v809 = vmul.f32 %v543, 2.0
    %v810 = vmul.f32 %v545, 2.0
    %v811 = vmul.f32 %v547, 2.0
    %v812 = vmul.f32 %v549, 2.0
    %v813 = vmul.f32 %v551, 2.0
    %v814 = vmul.f32 %v553, 2.0
    %v815 = vmul.f32 %v555, 2.0
    %v816 = vmul.f32 %v557, 2.0
    %v817 = vmul.f32 %v559, 2.0
    %v818 = vmul.f32 %v561, 2.0
    %v819 = vmul.f32 %v563, 2.0
    %v820 = vadd.f32 %v804, %v452
    %v821 = vadd.f32 %v805, %v453
    %v822 = vadd.f32 %v806, %v454
    %v823 = vadd.f32 %v807, %v455
    %v824 = vadd.f32 %v808, %v456
    %v825 = vadd.f32 %v809, %v457
    %v826 = vadd.f32 %v810, %v458
    %v827 = vadd.f32 %v811, %v459
    %v828 = vadd.f32 %v812, %v460
    %v829 = vadd.f32 %v813, %v461
    %v830 = vadd.f32 %v814, %v462
    %v831 = vadd.f32 %v815, %v463
    %v832 = vadd.f32 %v816, %v464
    %v833 = vadd.f32 %v817, %v465
    %v834 = vadd.f32 %v818, %v466
    %v835 = vadd.f32 %v819, %v467
    %v836 = vmax.f32 %v820, 1e-12
    %v837 = vmax.f32 %v821, 1e-12
    %v838 = vmax.f32 %v822, 1e-12
    %v839 = vmax.f32 %v823, 1e-12
    %v840 = vmax.f32 %v824, 1e-12
    %v841 = vmax.f32 %v825, 1e-12
    %v842 = vmax.f32 %v826, 1e-12
    %v843 = vmax.f32 %v827, 1e-12
    %v844 = vmax.f32 %v828, 1e-12
    %v845 = vmax.f32 %v829, 1e-12
    %v846 = vmax.f32 %v830, 1e-12
    %v847 = vmax.f32 %v831, 1e-12
    %v848 = vmax.f32 %v832, 1e-12
    %v849 = vmax.f32 %v833, 1e-12
    %v850 = vmax.f32 %v834, 1e-12
    %v851 = vmax.f32 %v835, 1e-12
    %v852 = vrsqrt.pop %v836
    %v853 = vmul.f32 %v852, %v836
    %v854 = vmul.f32 %v853, %v852
    %v855 = vmul.f32 0.5, %v854
    %v856 = vsub.f32 1.5, %v855
    %v857 = vmul.f32 %v852, %v856
    %v858 = vmul.f32 %v836, %v857
    %vm859 = vcmp.eq.f32.partialorder %v836, inf
    %v860 = vsel %vm859, %v836, %v858
    %vm861 = vcmp.eq.f32.partialorder %v836, 0.0
    %v862 = vand.u32 %v836, 2147483648
    %v863 = vsel %vm861, %v862, %v860
    %v864 = vrsqrt.pop %v837
    %v865 = vmul.f32 %v864, %v837
    %v866 = vmul.f32 %v865, %v864
    %v867 = vmul.f32 0.5, %v866
    %v868 = vsub.f32 1.5, %v867
    %v869 = vmul.f32 %v864, %v868
    %v870 = vmul.f32 %v837, %v869
    %vm871 = vcmp.eq.f32.partialorder %v837, inf
    %v872 = vsel %vm871, %v837, %v870
    %vm873 = vcmp.eq.f32.partialorder %v837, 0.0
    %v874 = vand.u32 %v837, 2147483648
    %v875 = vsel %vm873, %v874, %v872
    %v876 = vrsqrt.pop %v838
    %v877 = vmul.f32 %v876, %v838
    %v878 = vmul.f32 %v877, %v876
    %v879 = vmul.f32 0.5, %v878
    %v880 = vsub.f32 1.5, %v879
    %v881 = vmul.f32 %v876, %v880
    %v882 = vmul.f32 %v838, %v881
    %vm883 = vcmp.eq.f32.partialorder %v838, inf
    %v884 = vsel %vm883, %v838, %v882
    %vm885 = vcmp.eq.f32.partialorder %v838, 0.0
    %v886 = vand.u32 %v838, 2147483648
    %v887 = vsel %vm885, %v886, %v884
    %v888 = vrsqrt.pop %v839
    %v889 = vmul.f32 %v888, %v839
    %v890 = vmul.f32 %v889, %v888
    %v891 = vmul.f32 0.5, %v890
    %v892 = vsub.f32 1.5, %v891
    %v893 = vmul.f32 %v888, %v892
    %v894 = vmul.f32 %v839, %v893
    %vm895 = vcmp.eq.f32.partialorder %v839, inf
    %v896 = vsel %vm895, %v839, %v894
    %vm897 = vcmp.eq.f32.partialorder %v839, 0.0
    %v898 = vand.u32 %v839, 2147483648
    %v899 = vsel %vm897, %v898, %v896
    %v900 = vrsqrt.pop %v840
    %v901 = vmul.f32 %v900, %v840
    %v902 = vmul.f32 %v901, %v900
    %v903 = vmul.f32 0.5, %v902
    %v904 = vsub.f32 1.5, %v903
    %v905 = vmul.f32 %v900, %v904
    %v906 = vmul.f32 %v840, %v905
    %vm907 = vcmp.eq.f32.partialorder %v840, inf
    %v908 = vsel %vm907, %v840, %v906
    %vm909 = vcmp.eq.f32.partialorder %v840, 0.0
    %v910 = vand.u32 %v840, 2147483648
    %v911 = vsel %vm909, %v910, %v908
    %v912 = vrsqrt.pop %v841
    %v913 = vmul.f32 %v912, %v841
    %v914 = vmul.f32 %v913, %v912
    %v915 = vmul.f32 0.5, %v914
    %v916 = vsub.f32 1.5, %v915
    %v917 = vmul.f32 %v912, %v916
    %v918 = vmul.f32 %v841, %v917
    %vm919 = vcmp.eq.f32.partialorder %v841, inf
    %v920 = vsel %vm919, %v841, %v918
    %vm921 = vcmp.eq.f32.partialorder %v841, 0.0
    %v922 = vand.u32 %v841, 2147483648
    %v923 = vsel %vm921, %v922, %v920
    %v924 = vrsqrt.pop %v842
    %v925 = vmul.f32 %v924, %v842
    %v926 = vmul.f32 %v925, %v924
    %v927 = vmul.f32 0.5, %v926
    %v928 = vsub.f32 1.5, %v927
    %v929 = vmul.f32 %v924, %v928
    %v930 = vmul.f32 %v842, %v929
    %vm931 = vcmp.eq.f32.partialorder %v842, inf
    %v932 = vsel %vm931, %v842, %v930
    %vm933 = vcmp.eq.f32.partialorder %v842, 0.0
    %v934 = vand.u32 %v842, 2147483648
    %v935 = vsel %vm933, %v934, %v932
    %v936 = vrsqrt.pop %v843
    %v937 = vmul.f32 %v936, %v843
    %v938 = vmul.f32 %v937, %v936
    %v939 = vmul.f32 0.5, %v938
    %v940 = vsub.f32 1.5, %v939
    %v941 = vmul.f32 %v936, %v940
    %v942 = vmul.f32 %v843, %v941
    %vm943 = vcmp.eq.f32.partialorder %v843, inf
    %v944 = vsel %vm943, %v843, %v942
    %vm945 = vcmp.eq.f32.partialorder %v843, 0.0
    %v946 = vand.u32 %v843, 2147483648
    %v947 = vsel %vm945, %v946, %v944
    %v948 = vrsqrt.pop %v844
    %v949 = vmul.f32 %v948, %v844
    %v950 = vmul.f32 %v949, %v948
    %v951 = vmul.f32 0.5, %v950
    %v952 = vsub.f32 1.5, %v951
    %v953 = vmul.f32 %v948, %v952
    %v954 = vmul.f32 %v844, %v953
    %vm955 = vcmp.eq.f32.partialorder %v844, inf
    %v956 = vsel %vm955, %v844, %v954
    %vm957 = vcmp.eq.f32.partialorder %v844, 0.0
    %v958 = vand.u32 %v844, 2147483648
    %v959 = vsel %vm957, %v958, %v956
    %v960 = vrsqrt.pop %v845
    %v961 = vmul.f32 %v960, %v845
    %v962 = vmul.f32 %v961, %v960
    %v963 = vmul.f32 0.5, %v962
    %v964 = vsub.f32 1.5, %v963
    %v965 = vmul.f32 %v960, %v964
    %v966 = vmul.f32 %v845, %v965
    %vm967 = vcmp.eq.f32.partialorder %v845, inf
    %v968 = vsel %vm967, %v845, %v966
    %vm969 = vcmp.eq.f32.partialorder %v845, 0.0
    %v970 = vand.u32 %v845, 2147483648
    %v971 = vsel %vm969, %v970, %v968
    %v972 = vrsqrt.pop %v846
    %v973 = vmul.f32 %v972, %v846
    %v974 = vmul.f32 %v973, %v972
    %v975 = vmul.f32 0.5, %v974
    %v976 = vsub.f32 1.5, %v975
    %v977 = vmul.f32 %v972, %v976
    %v978 = vmul.f32 %v846, %v977
    %vm979 = vcmp.eq.f32.partialorder %v846, inf
    %v980 = vsel %vm979, %v846, %v978
    %vm981 = vcmp.eq.f32.partialorder %v846, 0.0
    %v982 = vand.u32 %v846, 2147483648
    %v983 = vsel %vm981, %v982, %v980
    %v984 = vrsqrt.pop %v847
    %v985 = vmul.f32 %v984, %v847
    %v986 = vmul.f32 %v985, %v984
    %v987 = vmul.f32 0.5, %v986
    %v988 = vsub.f32 1.5, %v987
    %v989 = vmul.f32 %v984, %v988
    %v990 = vmul.f32 %v847, %v989
    %vm991 = vcmp.eq.f32.partialorder %v847, inf
    %v992 = vsel %vm991, %v847, %v990
    %vm993 = vcmp.eq.f32.partialorder %v847, 0.0
    %v994 = vand.u32 %v847, 2147483648
    %v995 = vsel %vm993, %v994, %v992
    %v996 = vrsqrt.pop %v848
    %v997 = vmul.f32 %v996, %v848
    %v998 = vmul.f32 %v997, %v996
    %v999 = vmul.f32 0.5, %v998
    %v1000 = vsub.f32 1.5, %v999
    %v1001 = vmul.f32 %v996, %v1000
    %v1002 = vmul.f32 %v848, %v1001
    %vm1003 = vcmp.eq.f32.partialorder %v848, inf
    %v1004 = vsel %vm1003, %v848, %v1002
    %vm1005 = vcmp.eq.f32.partialorder %v848, 0.0
    %v1006 = vand.u32 %v848, 2147483648
    %v1007 = vsel %vm1005, %v1006, %v1004
    %v1008 = vrsqrt.pop %v849
    %v1009 = vmul.f32 %v1008, %v849
    %v1010 = vmul.f32 %v1009, %v1008
    %v1011 = vmul.f32 0.5, %v1010
    %v1012 = vsub.f32 1.5, %v1011
    %v1013 = vmul.f32 %v1008, %v1012
    %v1014 = vmul.f32 %v849, %v1013
    %vm1015 = vcmp.eq.f32.partialorder %v849, inf
    %v1016 = vsel %vm1015, %v849, %v1014
    %vm1017 = vcmp.eq.f32.partialorder %v849, 0.0
    %v1018 = vand.u32 %v849, 2147483648
    %v1019 = vsel %vm1017, %v1018, %v1016
    %v1020 = vrsqrt.pop %v850
    %v1021 = vmul.f32 %v1020, %v850
    %v1022 = vmul.f32 %v1021, %v1020
    %v1023 = vmul.f32 0.5, %v1022
    %v1024 = vsub.f32 1.5, %v1023
    %v1025 = vmul.f32 %v1020, %v1024
    %v1026 = vmul.f32 %v850, %v1025
    %vm1027 = vcmp.eq.f32.partialorder %v850, inf
    %v1028 = vsel %vm1027, %v850, %v1026
    %vm1029 = vcmp.eq.f32.partialorder %v850, 0.0
    %v1030 = vand.u32 %v850, 2147483648
    %v1031 = vsel %vm1029, %v1030, %v1028
    %v1032 = vrsqrt.pop %v851
    %v1033 = vmul.f32 %v1032, %v851
    %v1034 = vmul.f32 %v1033, %v1032
    %v1035 = vmul.f32 0.5, %v1034
    %v1036 = vsub.f32 1.5, %v1035
    %v1037 = vmul.f32 %v1032, %v1036
    %v1038 = vmul.f32 %v851, %v1037
    %vm1039 = vcmp.eq.f32.partialorder %v851, inf
    %v1040 = vsel %vm1039, %v851, %v1038
    %vm1041 = vcmp.eq.f32.partialorder %v851, 0.0
    %v1042 = vand.u32 %v851, 2147483648
    %v1043 = vsel %vm1041, %v1042, %v1040
    %v1044 = vsub.f32 %v623, %v863
    %v1045 = vsub.f32 %v635, %v875
    %v1046 = vsub.f32 %v647, %v887
    %v1047 = vsub.f32 %v659, %v899
    %v1048 = vsub.f32 %v671, %v911
    %v1049 = vsub.f32 %v683, %v923
    %v1050 = vsub.f32 %v695, %v935
    %v1051 = vsub.f32 %v707, %v947
    %v1052 = vsub.f32 %v719, %v959
    %v1053 = vsub.f32 %v731, %v971
    %v1054 = vsub.f32 %v743, %v983
    %v1055 = vsub.f32 %v755, %v995
    %v1056 = vsub.f32 %v767, %v1007
    %v1057 = vsub.f32 %v779, %v1019
    %v1058 = vsub.f32 %v791, %v1031
    %v1059 = vsub.f32 %v803, %v1043
    %v1060 = vadd.f32 %v1044, 0.3
    %v1061 = vadd.f32 %v1045, 0.3
    %v1062 = vadd.f32 %v1046, 0.3
    %v1063 = vadd.f32 %v1047, 0.3
    %v1064 = vadd.f32 %v1048, 0.3
    %v1065 = vadd.f32 %v1049, 0.3
    %v1066 = vadd.f32 %v1050, 0.3
    %v1067 = vadd.f32 %v1051, 0.3
    %v1068 = vadd.f32 %v1052, 0.3
    %v1069 = vadd.f32 %v1053, 0.3
    %v1070 = vadd.f32 %v1054, 0.3
    %v1071 = vadd.f32 %v1055, 0.3
    %v1072 = vadd.f32 %v1056, 0.3
    %v1073 = vadd.f32 %v1057, 0.3
    %v1074 = vadd.f32 %v1058, 0.3
    %v1075 = vadd.f32 %v1059, 0.3
    %v1076 = vmax.f32 %v1060, 0.0
    %v1077 = vmax.f32 %v1061, 0.0
    %v1078 = vmax.f32 %v1062, 0.0
    %v1079 = vmax.f32 %v1063, 0.0
    %v1080 = vmax.f32 %v1064, 0.0
    %v1081 = vmax.f32 %v1065, 0.0
    %v1082 = vmax.f32 %v1066, 0.0
    %v1083 = vmax.f32 %v1067, 0.0
    %v1084 = vmax.f32 %v1068, 0.0
    %v1085 = vmax.f32 %v1069, 0.0
    %v1086 = vmax.f32 %v1070, 0.0
    %v1087 = vmax.f32 %v1071, 0.0
    %v1088 = vmax.f32 %v1072, 0.0
    %v1089 = vmax.f32 %v1073, 0.0
    %v1090 = vmax.f32 %v1074, 0.0
    %v1091 = vmax.f32 %v1075, 0.0
    %vm1092 = vcmp.ne.f32.partialorder %v155, -1.0
    %vm1093 = vcmp.ne.f32.partialorder %v156, -1.0
    %vm1094 = vcmp.ne.f32.partialorder %v157, -1.0
    %vm1095 = vcmp.ne.f32.partialorder %v158, -1.0
    %vm1096 = vcmp.ne.f32.partialorder %v159, -1.0
    %vm1097 = vcmp.ne.f32.partialorder %v160, -1.0
    %vm1098 = vcmp.ne.f32.partialorder %v161, -1.0
    %vm1099 = vcmp.ne.f32.partialorder %v162, -1.0
    %vm1100 = vcmp.ne.f32.partialorder %v163, -1.0
    %vm1101 = vcmp.ne.f32.partialorder %v164, -1.0
    %vm1102 = vcmp.ne.f32.partialorder %v165, -1.0
    %vm1103 = vcmp.ne.f32.partialorder %v166, -1.0
    %vm1104 = vcmp.ne.f32.partialorder %v167, -1.0
    %vm1105 = vcmp.ne.f32.partialorder %v168, -1.0
    %vm1106 = vcmp.ne.f32.partialorder %v169, -1.0
    %vm1107 = vcmp.ne.f32.partialorder %v170, -1.0
    %v1108 = vsel %vm1092, 1, 0
    %v1109 = vsel %vm1093, 1, 0
    %v1110 = vsel %vm1094, 1, 0
    %v1111 = vsel %vm1095, 1, 0
    %v1112 = vsel %vm1096, 1, 0
    %v1113 = vsel %vm1097, 1, 0
    %v1114 = vsel %vm1098, 1, 0
    %v1115 = vsel %vm1099, 1, 0
    %v1116 = vsel %vm1100, 1, 0
    %v1117 = vsel %vm1101, 1, 0
    %v1118 = vsel %vm1102, 1, 0
    %v1119 = vsel %vm1103, 1, 0
    %v1120 = vsel %vm1104, 1, 0
    %v1121 = vsel %vm1105, 1, 0
    %v1122 = vsel %vm1106, 1, 0
    %v1123 = vsel %vm1107, 1, 0
    %v1124 = vcvt.s32.f32 %v1108
    %v1125 = vcvt.s32.f32 %v1109
    %v1126 = vcvt.s32.f32 %v1110
    %v1127 = vcvt.s32.f32 %v1111
    %v1128 = vcvt.s32.f32 %v1112
    %v1129 = vcvt.s32.f32 %v1113
    %v1130 = vcvt.s32.f32 %v1114
    %v1131 = vcvt.s32.f32 %v1115
    %v1132 = vcvt.s32.f32 %v1116
    %v1133 = vcvt.s32.f32 %v1117
    %v1134 = vcvt.s32.f32 %v1118
    %v1135 = vcvt.s32.f32 %v1119
    %v1136 = vcvt.s32.f32 %v1120
    %v1137 = vcvt.s32.f32 %v1121
    %v1138 = vcvt.s32.f32 %v1122
    %v1139 = vcvt.s32.f32 %v1123
    %v1140 = vmul.f32 %v1076, %v1124
    %v1141 = vmul.f32 %v1077, %v1125
    %v1142 = vmul.f32 %v1078, %v1126
    %v1143 = vmul.f32 %v1079, %v1127
    %v1144 = vmul.f32 %v1080, %v1128
    %v1145 = vmul.f32 %v1081, %v1129
    %v1146 = vmul.f32 %v1082, %v1130
    %v1147 = vmul.f32 %v1083, %v1131
    %v1148 = vmul.f32 %v1084, %v1132
    %v1149 = vmul.f32 %v1085, %v1133
    %v1150 = vmul.f32 %v1086, %v1134
    %v1151 = vmul.f32 %v1087, %v1135
    %v1152 = vmul.f32 %v1088, %v1136
    %v1153 = vmul.f32 %v1089, %v1137
    %v1154 = vmul.f32 %v1090, %v1138
    %v1155 = vmul.f32 %v1091, %v1139
    %vm1156 = vcmask 7168
    %1157 = vst.msk [vmem:[%s5] sm:$0xff] %vm1156, %v1140
    %1158 = vst.msk [vmem:[%s5 + $0x8] sm:$0xff] %vm1156, %v1141
    %1159 = vst.msk [vmem:[%s5 + $0x10] sm:$0xff] %vm1156, %v1142
    %1160 = vst.msk [vmem:[%s5 + $0x18] sm:$0xff] %vm1156, %v1143
    %1161 = vst.msk [vmem:[%s5 + $0x20] sm:$0xff] %vm1156, %v1144
    %1162 = vst.msk [vmem:[%s5 + $0x28] sm:$0xff] %vm1156, %v1145
    %1163 = vst.msk [vmem:[%s5 + $0x30] sm:$0xff] %vm1156, %v1146
    %1164 = vst.msk [vmem:[%s5 + $0x38] sm:$0xff] %vm1156, %v1147
    %1165 = vst.msk [vmem:[%s5 + $0x40] sm:$0xff] %vm1156, %v1148
    %1166 = vst.msk [vmem:[%s5 + $0x48] sm:$0xff] %vm1156, %v1149
    %1167 = vst.msk [vmem:[%s5 + $0x50] sm:$0xff] %vm1156, %v1150
    %1168 = vst.msk [vmem:[%s5 + $0x58] sm:$0xff] %vm1156, %v1151
    %1169 = vst.msk [vmem:[%s5 + $0x60] sm:$0xff] %vm1156, %v1152
    %1170 = vst.msk [vmem:[%s5 + $0x68] sm:$0xff] %vm1156, %v1153
    %1171 = vst.msk [vmem:[%s5 + $0x70] sm:$0xff] %vm1156, %v1154
    %1172 = vst.msk [vmem:[%s5 + $0x78] sm:$0xff] %vm1156, %v1155
  $region29: #{tpu_custom_call.1} parent=0 // pred_fallthru
    _
  // Predicated region
  $region30: #{tpu_custom_call.1} parent=0 // pred_check
    _
  $region31: #{tpu_custom_call.1} parent=0 // pred_check_branch
    %1174 = sbr.rel (0) target = $region33
  $region32: #{tpu_custom_call.1} parent=0 // pred_region
    _
  $region33: #{tpu_custom_call.1} parent=0 // pred_fallthru
    _
  // Predicated region
  $region34: #{tpu_custom_call.1} parent=0 // pred_check
    _
  $region35: #{tpu_custom_call.1} parent=0 // pred_check_branch
    %1176 = sbr.rel (0) target = $region37
  $region36: #{tpu_custom_call.1} parent=0 // pred_region
    _
  $region37: #{tpu_custom_call.1} parent=0 // pred_fallthru
    _

</llo_original>
